<compile_context>
chip_gen: v5e
topology: v5e:2x2
jax: 0.10.0
libtpu: 0.0.40
codegen_flags: <defaults>
</compile_context>

<pallas_src>
import functools

import jax
import jax.numpy as jnp
from jax.experimental import pallas as pl
from jax.experimental.pallas import tpu as pltpu

_LANE = 128

# ----------------------------------------------------------------------------
# Direction table + label_weights (cosine-distance kernel), built once in JAX.
# ----------------------------------------------------------------------------
_DIRS = jnp.array(
    [[0.0, 0.0, 1.0], [0.0, 0.0, -1.0], [0.0, -0.7071, 0.7071], [0.0, -1.0, 0.0],
     [0.0, -0.7071, -0.7071], [0.0, 0.7071, -0.7071], [0.0, 1.0, 0.0],
     [0.0, 0.7071, 0.7071], [0.7071, 0.0, 0.7071], [1.0, 0.0, 0.0],
     [0.7071, 0.0, -0.7071], [-0.7071, 0.0, -0.7071], [-1.0, 0.0, 0.0],
     [-0.7071, 0.0, 0.7071], [0.5, -0.7071, 0.5], [-0.5, -0.7071, -0.5],
     [-0.5, 0.7071, -0.5], [0.5, 0.7071, 0.5], [0.7071, -0.7071, 0.0],
     [-0.7071, -0.7071, 0.0], [-0.7071, 0.7071, 0.0], [0.7071, 0.7071, 0.0],
     [0.5, -0.7071, -0.5], [-0.5, -0.7071, 0.5], [-0.5, 0.7071, 0.5],
     [0.5, 0.7071, -0.5]], dtype=jnp.float32)


def _build_label_weights(dirs: jnp.ndarray) -> jnp.ndarray:
    # cosine_distance = 1 - cos_sim, norms clamped at eps (PyTorch semantics)
    eps = 1e-8
    norms = jnp.maximum(jnp.linalg.norm(dirs, axis=-1), eps)
    unit = dirs / norms[:, None]
    return (1.0 - unit @ unit.T).astype(jnp.float32)


def _round_up(n: int, m: int) -> int:
    return (n + m - 1) // m * m


# ----------------------------------------------------------------------------
# Pallas kernel: per batch tile in (C, TB) layout, emits lane-dense per-example
# dir / ce contributions (masked for batch padding).  No batch reduction inside.
# ----------------------------------------------------------------------------
def _combined_loss_kernel(x_ref, tgt_ref, wsq_ref, dir_ref, ce_ref, *,
                          batch, smoothing):
    x = x_ref[...]            # (C, TB) f32, batch on lanes
    tgt = tgt_ref[...]        # (1, TB) i32
    wsq_t = wsq_ref[...]      # (C, C) f32, = (W*W)^T precomputed on host
    c, tb = x.shape

    row = jax.lax.broadcasted_iota(jnp.int32, (c, tb), 0)   # class index per row

    # max / argmax over the class axis (first occurrence of the max, as torch.argmax)
    xmax = jnp.max(x, axis=0, keepdims=True)                 # (1, TB)
    is_max = x == xmax
    pred = jnp.min(jnp.where(is_max, row, c), axis=0, keepdims=True)  # (1, TB)

    onehot_pred = (row == pred).astype(jnp.float32)          # (C, TB)
    onehot_tgt = (row == tgt).astype(jnp.float32)            # (C, TB)

    # dir term: W^2[pred_i, tgt_i] via MXU one-hot gather, lane-dense result.
    # g[k, i] = sum_j (W^2)^T[k, j] * onehot_pred[j, i] = W^2[pred_i, k]
    g = jnp.dot(wsq_t, onehot_pred, preferred_element_type=jnp.float32)  # (C, TB)
    dir_vec = jnp.sum(g * onehot_tgt, axis=0, keepdims=True)             # (1, TB)

    # label-smoothed cross entropy (algebraically simplified)
    logz = jnp.log(jnp.sum(jnp.exp(x - xmax), axis=0, keepdims=True)) + xmax  # (1, TB)
    x_tgt = jnp.sum(onehot_tgt * x, axis=0, keepdims=True)                    # (1, TB)
    colsum_x = jnp.sum(x, axis=0, keepdims=True)                              # (1, TB)
    eps = smoothing / c
    off = eps / (c - 1)
    # ce = -[(1-eps) * logp_tgt + off * (sum_c logp_c - logp_tgt)]
    ce_vec = -((1.0 - eps - off) * (x_tgt - logz) + off * (colsum_x - c * logz))

    # mask out batch-padding columns of the last tile
    lane = jax.lax.broadcasted_iota(jnp.int32, (1, tb), 1)
    col = pl.program_id(0) * tb + lane
    mask = (col < batch).astype(jnp.float32)

    dir_ref[...] = jnp.reshape(dir_vec * mask, (1, 1, tb))
    ce_ref[...] = jnp.reshape(ce_vec * mask, (1, 1, tb))


def combined_metric_diff_ce(x, target, label_weights, *, alpha=0.5,
                            smoothing=0.1, tile_b=1024):
    """x: (B, C) f32 logits, target: (B,) int class ids. Returns scalar f32 loss."""
    b, c = x.shape

    # Batch tile: multiple of 128 lanes; (C=26, TB=1024) f32 block is ~104 KiB,
    # comfortably within v5e's 16 MiB / v7x's 32 MiB default scoped VMEM even
    # with double buffering, so no vmem_limit_bytes override is needed.
    tb = min(_round_up(tile_b, _LANE), _round_up(b, _LANE))
    b_pad = _round_up(b, tb)
    num_tiles = b_pad // tb

    # Layout plumbing on the host: batch -> lanes, pad batch, square+transpose W.
    x_t = jnp.pad(x.astype(jnp.float32).T, ((0, 0), (0, b_pad - b)))          # (C, B_pad)
    tgt = jnp.pad(target.astype(jnp.int32).reshape(1, b),
                  ((0, 0), (0, b_pad - b)))                                    # (1, B_pad)
    wsq_t = jnp.square(label_weights.astype(jnp.float32)).T                    # (C, C)

    kernel = functools.partial(
        _combined_loss_kernel, batch=b, smoothing=float(smoothing))

    dir_part, ce_part = pl.pallas_call(
        kernel,
        out_shape=(jax.ShapeDtypeStruct((num_tiles, 1, tb), jnp.float32),
                   jax.ShapeDtypeStruct((num_tiles, 1, tb), jnp.float32)),
        grid=(num_tiles,),
        in_specs=[
            pl.BlockSpec((c, tb), lambda i: (0, i)),      # logits tile (C, TB)
            pl.BlockSpec((1, tb), lambda i: (0, i)),      # targets tile (1, TB)
            pl.BlockSpec((c, c), lambda i: (0, 0)),       # (W^2)^T, resident
        ],
        out_specs=(pl.BlockSpec((1, 1, tb), lambda i: (i, 0, 0)),
                   pl.BlockSpec((1, 1, tb), lambda i: (i, 0, 0))),
        compiler_params=pltpu.CompilerParams(
            dimension_semantics=("parallel",)),           # megacore-shardable on v7x
    )(x_t, tgt, wsq_t)

    # Tiny epilogue reduction + alpha-combine in XLA.
    dir_mean = jnp.sum(dir_part) / b
    ce_mean = jnp.sum(ce_part) / b
    return alpha * dir_mean + (1.0 - alpha) * ce_mean


# ----------------------------------------------------------------------------
# Pure-JAX reference (mirrors the PyTorch forward) for sanity checking.
# ----------------------------------------------------------------------------
def _reference(x, target, w, alpha=0.5, smoothing=0.1):
    b, c = x.shape
    pred = jnp.argmax(jax.nn.softmax(x, axis=1), axis=1)
    dir_diff = jnp.mean(w[pred, target] ** 2)
    eps = smoothing / c
    one_hot = jax.nn.one_hot(target, c, dtype=x.dtype)
    smooth = one_hot * (1.0 - eps) + (1.0 - one_hot) * eps / (c - 1)
    log_prb = jax.nn.log_softmax(x, axis=1)
    ce = jnp.mean(-jnp.sum(smooth * log_prb, axis=1))
    return alpha * dir_diff + (1.0 - alpha) * ce


if __name__ == "__main__":
    C = 26  # 26 direction classes (fixed by the module)
    W = _build_label_weights(_DIRS)

    key = jax.random.PRNGKey(0)
    k1, k2, k3, k4 = jax.random.split(key, 4)

    # Small single-tile case.
    B = 8
    x = jax.random.normal(k1, (B, C), dtype=jnp.float32)
    target = jax.random.randint(k2, (B,), 0, C, dtype=jnp.int32)
    loss = jax.block_until_ready(
        combined_metric_diff_ce(x, target, W, alpha=0.5, smoothing=0.1))
    ref = _reference(x, target, W, alpha=0.5, smoothing=0.1)
    assert jnp.allclose(loss, ref, atol=1e-5, rtol=1e-5), (loss, ref)

    # Multi-tile + batch-remainder-masking path (3 tiles of 128, B=300).
    B2 = 300
    x2 = jax.random.normal(k3, (B2, C), dtype=jnp.float32)
    target2 = jax.random.randint(k4, (B2,), 0, C, dtype=jnp.int32)
    loss2 = jax.block_until_ready(
        combined_metric_diff_ce(x2, target2, W, alpha=0.5, smoothing=0.1, tile_b=128))
    ref2 = _reference(x2, target2, W, alpha=0.5, smoothing=0.1)
    assert jnp.allclose(loss2, ref2, atol=1e-5, rtol=1e-5), (loss2, ref2)

    print("KERNEL_OK")
</pallas_src>

<mosaic_0001>
module attributes {stable_mosaic.version = 11 : i64} {
  func.func @_combined_loss_kernel(%arg0: i32, %arg1: memref<26x128xf32, #tpu.memory_space<vmem>>, %arg2: memref<1x128xi32, #tpu.memory_space<vmem>>, %arg3: memref<26x26xf32, #tpu.memory_space<vmem>>, %arg4: memref<1x1x128xf32, #tpu.memory_space<vmem>>, %arg5: memref<1x1x128xf32, #tpu.memory_space<vmem>>) attributes {dimension_semantics = [#tpu.dimension_semantics<parallel>], iteration_bounds = array<i64: 1>, scalar_prefetch = 0 : i64, scratch_operands = 0 : i64, tpu.core_type = #tpu.core_type<tc>, window_params = [{transform_indices = @transform_0, window_bounds = array<i64: 26, 128>}, {transform_indices = @transform_1, window_bounds = array<i64: 1, 128>}, {pipeline_mode = #tpu.pipeline_mode<synchronous>, transform_indices = @transform_2, window_bounds = array<i64: 26, 26>}, {transform_indices = @transform_3, window_bounds = array<i64: 1, 1, 128>}, {transform_indices = @transform_4, window_bounds = array<i64: 1, 1, 128>}]} {
    %c0 = arith.constant 0 : index
    %c0_0 = arith.constant 0 : index
    %0 = vector.load %arg1[%c0, %c0_0] : memref<26x128xf32, #tpu.memory_space<vmem>>, vector<26x128xf32>
    %c0_1 = arith.constant 0 : index
    %c0_2 = arith.constant 0 : index
    %1 = vector.load %arg2[%c0_1, %c0_2] : memref<1x128xi32, #tpu.memory_space<vmem>>, vector<1x128xi32>
    %c0_3 = arith.constant 0 : index
    %c0_4 = arith.constant 0 : index
    %2 = vector.load %arg3[%c0_3, %c0_4] : memref<26x26xf32, #tpu.memory_space<vmem>>, vector<26x26xf32>
    %3 = tpu.iota {dimensions = array<i32: 0>} : vector<26x128xi32>
    %cst = arith.constant dense<0xFF800000> : vector<128xf32>
    %4 = vector.multi_reduction <maximumf>, %0, %cst [0] : vector<26x128xf32> to vector<128xf32>
    %5 = vector.shape_cast %4 : vector<128xf32> to vector<1x128xf32>
    %6 = vector.broadcast %5 : vector<1x128xf32> to vector<26x128xf32>
    %7 = arith.cmpf oeq, %0, %6 : vector<26x128xf32>
    %c26_i32 = arith.constant 26 : i32
    %8 = vector.broadcast %c26_i32 : i32 to vector<26x128xi32>
    %9 = arith.select %7, %3, %8 : vector<26x128xi1>, vector<26x128xi32>
    %cst_5 = arith.constant dense<2147483647> : vector<128xi32>
    %10 = vector.multi_reduction <minsi>, %9, %cst_5 [0] : vector<26x128xi32> to vector<128xi32>
    %11 = vector.shape_cast %10 : vector<128xi32> to vector<1x128xi32>
    %12 = vector.broadcast %11 : vector<1x128xi32> to vector<26x128xi32>
    %13 = arith.cmpi eq, %3, %12 : vector<26x128xi32>
    %14 = arith.extui %13 : vector<26x128xi1> to vector<26x128xi32>
    %15 = arith.sitofp %14 : vector<26x128xi32> to vector<26x128xf32>
    %16 = vector.broadcast %1 : vector<1x128xi32> to vector<26x128xi32>
    %17 = arith.cmpi eq, %3, %16 : vector<26x128xi32>
    %18 = arith.extui %17 : vector<26x128xi1> to vector<26x128xi32>
    %19 = arith.sitofp %18 : vector<26x128xi32> to vector<26x128xf32>
    %cst_6 = arith.constant dense<0.000000e+00> : vector<26x128xf32>
    %20 = tpu.matmul %2, %15, %cst_6 {dimension_numbers = #tpu.dot_dimension_numbers<[1], [0], [0], [1], [0, 0, 1, 1], [], []>} : vector<26x26xf32>, vector<26x128xf32>, vector<26x128xf32> -> vector<26x128xf32>
    %21 = arith.mulf %20, %19 : vector<26x128xf32>
    %cst_7 = arith.constant dense<0.000000e+00> : vector<128xf32>
    %22 = vector.multi_reduction <add>, %21, %cst_7 [0] : vector<26x128xf32> to vector<128xf32>
    %23 = vector.shape_cast %22 : vector<128xf32> to vector<1x128xf32>
    %24 = vector.broadcast %5 : vector<1x128xf32> to vector<26x128xf32>
    %25 = arith.subf %0, %24 : vector<26x128xf32>
    %26 = math.exp %25 : vector<26x128xf32>
    %cst_8 = arith.constant dense<0.000000e+00> : vector<128xf32>
    %27 = vector.multi_reduction <add>, %26, %cst_8 [0] : vector<26x128xf32> to vector<128xf32>
    %28 = vector.shape_cast %27 : vector<128xf32> to vector<1x128xf32>
    %29 = math.log %28 : vector<1x128xf32>
    %30 = arith.addf %29, %5 : vector<1x128xf32>
    %31 = arith.mulf %19, %0 : vector<26x128xf32>
    %cst_9 = arith.constant dense<0.000000e+00> : vector<128xf32>
    %32 = vector.multi_reduction <add>, %31, %cst_9 [0] : vector<26x128xf32> to vector<128xf32>
    %33 = vector.shape_cast %32 : vector<128xf32> to vector<1x128xf32>
    %cst_10 = arith.constant dense<0.000000e+00> : vector<128xf32>
    %34 = vector.multi_reduction <add>, %0, %cst_10 [0] : vector<26x128xf32> to vector<128xf32>
    %35 = vector.shape_cast %34 : vector<128xf32> to vector<1x128xf32>
    %36 = arith.subf %33, %30 : vector<1x128xf32>
    %cst_11 = arith.constant 0.995999991 : f32
    %37 = vector.broadcast %cst_11 : f32 to vector<1x128xf32>
    %38 = arith.mulf %37, %36 : vector<1x128xf32>
    %cst_12 = arith.constant 2.600000e+01 : f32
    %39 = vector.broadcast %cst_12 : f32 to vector<1x128xf32>
    %40 = arith.mulf %39, %30 : vector<1x128xf32>
    %41 = arith.subf %35, %40 : vector<1x128xf32>
    %cst_13 = arith.constant 1.53846151E-4 : f32
    %42 = vector.broadcast %cst_13 : f32 to vector<1x128xf32>
    %43 = arith.mulf %42, %41 : vector<1x128xf32>
    %44 = arith.addf %38, %43 : vector<1x128xf32>
    %cst_14 = arith.constant 0.000000e+00 : f32
    %45 = vector.broadcast %cst_14 : f32 to vector<1x128xf32>
    %46 = arith.subf %45, %44 : vector<1x128xf32>
    %47 = tpu.iota {dimensions = array<i32: 1>} : vector<1x128xi32>
    %c128_i32 = arith.constant 128 : i32
    %48 = arith.muli %arg0, %c128_i32 : i32
    %49 = vector.broadcast %48 : i32 to vector<1x128xi32>
    %50 = arith.addi %49, %47 : vector<1x128xi32>
    %c8_i32 = arith.constant 8 : i32
    %51 = vector.broadcast %c8_i32 : i32 to vector<1x128xi32>
    %52 = arith.cmpi slt, %50, %51 : vector<1x128xi32>
    %53 = arith.extui %52 : vector<1x128xi1> to vector<1x128xi32>
    %54 = arith.sitofp %53 : vector<1x128xi32> to vector<1x128xf32>
    %55 = arith.mulf %23, %54 : vector<1x128xf32>
    %56 = vector.shape_cast %55 : vector<1x128xf32> to vector<1x1x128xf32>
    %c0_15 = arith.constant 0 : index
    %c0_16 = arith.constant 0 : index
    %c0_17 = arith.constant 0 : index
    %57 = vector.load %arg4[%c0_15, %c0_16, %c0_17] : memref<1x1x128xf32, #tpu.memory_space<vmem>>, vector<1x1x128xf32>
    tpu.vector_store %arg4[%c0_15, %c0_16, %c0_17], %56 {strides = array<i32>} : memref<1x1x128xf32, #tpu.memory_space<vmem>>, vector<1x1x128xf32>,
    %58 = arith.mulf %46, %54 : vector<1x128xf32>
    %59 = vector.shape_cast %58 : vector<1x128xf32> to vector<1x1x128xf32>
    %c0_18 = arith.constant 0 : index
    %c0_19 = arith.constant 0 : index
    %c0_20 = arith.constant 0 : index
    %60 = vector.load %arg5[%c0_18, %c0_19, %c0_20] : memref<1x1x128xf32, #tpu.memory_space<vmem>>, vector<1x1x128xf32>
    tpu.vector_store %arg5[%c0_18, %c0_19, %c0_20], %59 {strides = array<i32>} : memref<1x1x128xf32, #tpu.memory_space<vmem>>, vector<1x1x128xf32>,
    return
  }
  func.func @transform_0(%arg0: i32) -> (i32, i32) {
    %c0_i32 = arith.constant 0 : i32
    %c0_i32_0 = arith.constant 0 : i32
    return %c0_i32, %arg0 : i32, i32
  }
  func.func @transform_1(%arg0: i32) -> (i32, i32) {
    %c0_i32 = arith.constant 0 : i32
    %c0_i32_0 = arith.constant 0 : i32
    return %c0_i32, %arg0 : i32, i32
  }
  func.func @transform_2(%arg0: i32) -> (i32, i32) {
    %c0_i32 = arith.constant 0 : i32
    %c0_i32_0 = arith.constant 0 : i32
    %c0_i32_1 = arith.constant 0 : i32
    return %c0_i32, %c0_i32_0 : i32, i32
  }
  func.func @transform_3(%arg0: i32) -> (i32, i32, i32) {
    %c0_i32 = arith.constant 0 : i32
    %c0_i32_0 = arith.constant 0 : i32
    %c0_i32_1 = arith.constant 0 : i32
    return %arg0, %c0_i32, %c0_i32_0 : i32, i32, i32
  }
  func.func @transform_4(%arg0: i32) -> (i32, i32, i32) {
    %c0_i32 = arith.constant 0 : i32
    %c0_i32_0 = arith.constant 0 : i32
    %c0_i32_1 = arith.constant 0 : i32
    return %arg0, %c0_i32, %c0_i32_0 : i32, i32, i32
  }
}

</mosaic_0001>

<llo_original>
// kernel: tpu_custom_call.1
$region0: #{tpu_custom_call.1}
  #allocation0 [shape = 'u32[]', space=smem, size = 0x4, offset = 0x4, fixed_abs, tag = 'smem constant byte address 0x4 - core index']
  #allocation1 [shape = 'u32[72,128]{1,0:T(1,128)}', space=vmem, size = 0x9000, scoped, tag = 'internal scratch']
  %s0 = inlined_call_operand.hbm [shape: f32[26,128], index: 0, kind: input, shape index: {}]
  %s1 = inlined_call_operand.hbm [shape: s32[1,128], index: 1, kind: input, shape index: {}]
  %s2 = inlined_call_operand.hbm [shape: f32[26,26], index: 2, kind: input, shape index: {}]
  %s3 = inlined_call_operand.hbm [shape: f32[1,1,128], index: 3, kind: output, shape index: {0}]
  %s4 = inlined_call_operand.hbm [shape: f32[1,1,128], index: 4, kind: output, shape index: {1}]
  %5 = xla_tuple %s3, %s4
  %s6 = sld [smem:[#allocation0]]
  $region42: #{tpu_custom_call.1} parent=0
    _
  %s8 = ssub.s32 1, %s6
  %s9 = scalar_select 0, %s8, %s6
  $region1: #{tpu_custom_call.1} parent=0
    #allocation2 [shape = 'u8[16384]{0}', space=vmem, size = 0x4000, scoped, tag = 'input window, operand 0, single buffered']
    #allocation3 [shape = 's32[1]{0}', space=sflag, size = 0x4, scoped, tag = 'scoped memory for tpu_custom_call.1']
    #allocation4 [shape = 's32[1]{0}', space=sflag, size = 0x4, scoped, tag = 'scoped memory for tpu_custom_call.1']
    #allocation5 [shape = 'u8[512]{0}', space=vmem, size = 0x400, scoped, tag = 'input window, operand 1, single buffered']
    #allocation6 [shape = 's32[1]{0}', space=sflag, size = 0x4, scoped, tag = 'scoped memory for tpu_custom_call.1']
    #allocation7 [shape = 'u8[16384]{0}', space=vmem, size = 0x4000, scoped, tag = 'input window, operand 2, single buffered']
    #allocation8 [shape = 'u8[512]{0}', space=vmem, size = 0x400, scoped, tag = 'output window, operand 0, single buffered']
    #allocation9 [shape = 'u8[512]{0}', space=vmem, size = 0x400, scoped, tag = 'output window, operand 1, single buffered']
    #allocation10 [shape = 's32[1]{0}', space=sflag, size = 0x4, scoped, tag = 'scoped memory for tpu_custom_call.1']
    %10 = vsyncpa [#allocation3], 0
    %11 = vsyncpa [#allocation6], 0
    %12 = vsyncpa [#allocation4], 0
    %13 = vsyncpa [#allocation10], 0
    // Predicated region
    $region2: #{tpu_custom_call.1} parent=1 // pred_check
      _
    $region3: #{tpu_custom_call.1} parent=1 // pred_check_branch
      %15 = sbr.rel (0) target = $region5
    $region4: #{tpu_custom_call.1} parent=1 // pred_region
      %17 = vsyncadd [#allocation3], 0
      %s18 = sshll.u32 %s0, 4
      %s19 = int_to_ptr.hbm [resolvable:$true] %s18
      %s20 = sshll.u32 [#allocation2], 4
      %s21 = int_to_ptr.vmem [resolvable:$true] %s20
      %26 = dma.hbm_to_vmem [thread:$0]  %s19, 512, %s21, [#allocation3], 128, 128, 8
    $region5: #{tpu_custom_call.1} parent=1 // pred_fallthru
      _
    // Predicated region
    $region6: #{tpu_custom_call.1} parent=1 // pred_check
      _
    $region7: #{tpu_custom_call.1} parent=1 // pred_check_branch
      %28 = sbr.rel (0) target = $region9
    $region8: #{tpu_custom_call.1} parent=1 // pred_region
      %30 = vsyncadd [#allocation6], 0
      %s32 = sshll.u32 %s1, 4
      %s33 = int_to_ptr.hbm [resolvable:$true] %s32
      %s34 = sshll.u32 [#allocation5], 4
      %s35 = int_to_ptr.vmem [resolvable:$true] %s34
      %37 = dma.hbm_to_vmem [thread:$0]  %s33, 16, %s35, [#allocation6]
    $region9: #{tpu_custom_call.1} parent=1 // pred_fallthru
      _
    // Predicated region
    $region10: #{tpu_custom_call.1} parent=1 // pred_check
      _
    $region11: #{tpu_custom_call.1} parent=1 // pred_check_branch
      %39 = sbr.rel (0) target = $region13
    $region12: #{tpu_custom_call.1} parent=1 // pred_region
      %41 = vsyncadd [#allocation6], 0
      %s42 = sshll.u32 %s2, 4
      %s43 = int_to_ptr.hbm [resolvable:$true] %s42
      %s44 = sshll.u32 [#allocation7], 4
      %s45 = int_to_ptr.vmem [resolvable:$true] %s44
      %50 = dma.hbm_to_vmem [thread:$0]  %s43, 512, %s45, [#allocation6], 128, 128, 8
    $region13: #{tpu_custom_call.1} parent=1 // pred_fallthru
      _
    // Predicated region
    $region14: #{tpu_custom_call.1} parent=1 // pred_check
      _
    $region15: #{tpu_custom_call.1} parent=1 // pred_check_branch
      %52 = sbr.rel (0) target = $region17
    $region16: #{tpu_custom_call.1} parent=1 // pred_region
      %54 = dma.done [#allocation3], 512
    $region17: #{tpu_custom_call.1} parent=1 // pred_fallthru
      _
    // Predicated region
    $region18: #{tpu_custom_call.1} parent=1 // pred_check
      _
    $region19: #{tpu_custom_call.1} parent=1 // pred_check_branch
      %56 = sbr.rel (0) target = $region21
    $region20: #{tpu_custom_call.1} parent=1 // pred_region
      %58 = dma.done [#allocation6], 16
    $region21: #{tpu_custom_call.1} parent=1 // pred_fallthru
      _
    // Predicated region
    $region22: #{tpu_custom_call.1} parent=1 // pred_check
      _
    $region23: #{tpu_custom_call.1} parent=1 // pred_check_branch
      %60 = sbr.rel (0) target = $region25
    $region24: #{tpu_custom_call.1} parent=1 // pred_region
      %62 = dma.done [#allocation6], 512
    $region25: #{tpu_custom_call.1} parent=1 // pred_fallthru
      _
    %v63 = vld [vmem:[#allocation2] sm:$0xff]
    %v64 = vld [vmem:[#allocation2 + $0x8] sm:$0xff]
    %v65 = vld [vmem:[#allocation2 + $0x10] sm:$0xff]
    %v66 = vld [vmem:[#allocation2 + $0x18] sm:$0x3]
    %v67 = vld [vmem:[#allocation5] sm:$0x1]
    %v68 = vld [vmem:[#allocation7] sm:$0xff]
    %v69 = vld [vmem:[#allocation7 + $0x8] sm:$0xff]
    %v70 = vld [vmem:[#allocation7 + $0x10] sm:$0xff]
    %v71 = vld [vmem:[#allocation7 + $0x18] sm:$0x3]
    %v72 = vlaneseq
    %v73 = vshrl.u32 %v72, 7
    %v74 = vadd.s32 %v73, 8
    %v75 = vadd.s32 %v73, 16
    %v76 = vadd.s32 %v73, 24
    %vm77 = vcmask 1041408
    %v78 = vsel %vm77, %v66, -inf
    %v79 = vmax.f32 %v63, %v64
    %v80 = vmax.f32 %v65, %v78
    %v81 = vmax.f32 %v79, %v80
    %v82 = vrot.slane %v81, 4
    %v83 = vmax.f32 %v81, %v82
    %v84 = vrot.slane %v83, 2
    %v85 = vmax.f32 %v83, %v84
    %v86 = vrot.slane %v85, 1
    %v87 = vmax.f32 %v85, %v86
    %vm88 = vcmp.eq.f32.partialorder %v63, %v87
    %vm89 = vcmp.eq.f32.partialorder %v64, %v87
    %vm90 = vcmp.eq.f32.partialorder %v65, %v87
    %vm91 = vcmp.eq.f32.partialorder %v66, %v87
    %v92 = vsel %vm88, %v73, 26
    %v93 = vsel %vm89, %v74, 26
    %v94 = vsel %vm90, %v75, 26
    %v95 = vsel %vm91, %v76, 26
    %v96 = vsel %vm77, %v95, 2147483647
    %vm97 = vcmp.lt.s32.totalorder %v92, %v93
    %v98 = vsel %vm97, %v92, %v93
    %vm99 = vcmp.lt.s32.totalorder %v94, %v96
    %v100 = vsel %vm99, %v94, %v96
    %vm101 = vcmp.lt.s32.totalorder %v98, %v100
    %v102 = vsel %vm101, %v98, %v100
    %v103 = vrot.slane %v102, 4
    %vm104 = vcmp.lt.s32.totalorder %v102, %v103
    %v105 = vsel %vm104, %v102, %v103
    %v106 = vrot.slane %v105, 2
    %vm107 = vcmp.lt.s32.totalorder %v105, %v106
    %v108 = vsel %vm107, %v105, %v106
    %v109 = vrot.slane %v108, 1
    %vm110 = vcmp.lt.s32.totalorder %v108, %v109
    %v111 = vsel %vm110, %v108, %v109
    %vm112 = vcmp.eq.s32.totalorder %v73, %v111
    %vm113 = vcmp.eq.s32.totalorder %v74, %v111
    %vm114 = vcmp.eq.s32.totalorder %v75, %v111
    %vm115 = vcmp.eq.s32.totalorder %v76, %v111
    %v116 = vsel %vm112, 1, 0
    %v117 = vsel %vm113, 1, 0
    %v118 = vsel %vm114, 1, 0
    %v119 = vsel %vm115, 1, 0
    %v120 = vcvt.s32.f32 %v116
    %v121 = vcvt.s32.f32 %v117
    %v122 = vcvt.s32.f32 %v118
    %v123 = vcvt.s32.f32 %v119
    %v124 = vperm.slane %v67, 0
    %vm125 = vcmp.eq.s32.totalorder %v73, %v124
    %vm126 = vcmp.eq.s32.totalorder %v74, %v124
    %vm127 = vcmp.eq.s32.totalorder %v75, %v124
    %vm128 = vcmp.eq.s32.totalorder %v76, %v124
    %v129 = vsel %vm125, 1, 0
    %v130 = vsel %vm126, 1, 0
    %v131 = vsel %vm127, 1, 0
    %v132 = vsel %vm128, 1, 0
    %v133 = vcvt.s32.f32 %v129
    %v134 = vcvt.s32.f32 %v130
    %v135 = vcvt.s32.f32 %v131
    %v136 = vcvt.s32.f32 %v132
    %vm137 = vcmask 211968
    %v139 = vsel %vm137, %v68, 0
    %v142 = vsel %vm137, %v69, 0
    %v145 = vsel %vm137, %v70, 0
    %v148 = vsel %vm137, %v71, 0
    %v151 = vsel %vm77, %v123, 0
    %153 = vmatpush.msra.mxu0 0.0
    %154 = vmatpush.msra.mxu0 0.0
    %155 = vmatpush.msra.mxu0 0.0
    %156 = vmatpush.msra.mxu0 0.0
    %157 = vmatpush.msra.mxu0 0.0
    %158 = vmatpush.msra.mxu0 0.0
    %159 = vmatpush.msra.mxu0 0.0
    %160 = vmatpush.msra.mxu0 0.0
    %161 = vmatpush.msra.mxu0 0.0
    %162 = vmatpush.msra.mxu0 0.0
    %163 = vmatpush.msra.mxu0 0.0
    %164 = vmatpush.msra.mxu0 0.0
    %165 = vmatpush.msra.mxu0 %v151
    %166 = vmatpush.msra.mxu0 %v122
    %167 = vmatpush.msra.mxu0 %v121
    %168 = vmatpush.msra.mxu0 %v120
    %169 = vmatmul.f32.gmra.mxu0 %v139
    %v170 = vpop.f32.mrf.mxu0
    %v171 = vadd.f32 0.0, %v170
    %172 = vmatmul.f32.gmra.mxu0 %v142
    %v173 = vpop.f32.mrf.mxu0
    %v174 = vadd.f32 0.0, %v173
    %175 = vmatmul.f32.gmra.mxu0 %v145
    %v176 = vpop.f32.mrf.mxu0
    %v177 = vadd.f32 0.0, %v176
    %178 = vmatmul.f32.gmra.mxu0 %v148
    %v179 = vpop.f32.mrf.mxu0
    %v180 = vadd.f32 0.0, %v179
    %181 = vdwg.mxu0
    %v182 = vmul.f32 %v171, %v133
    %v183 = vmul.f32 %v174, %v134
    %v184 = vmul.f32 %v177, %v135
    %v185 = vmul.f32 %v180, %v136
    %v186 = vadd.f32 %v182, %v183
    %v187 = vadd.f32 %v186, %v184
    %v188 = vsel %vm77, %v185, 0.0
    %v189 = vadd.f32 %v187, %v188
    %v190 = vrot.slane %v189, 4
    %v191 = vadd.f32 %v189, %v190
    %v192 = vrot.slane %v191, 2
    %v193 = vadd.f32 %v191, %v192
    %v194 = vrot.slane %v193, 1
    %v195 = vadd.f32 %v193, %v194
    %v196 = vsub.f32 %v63, %v87
    %v197 = vsub.f32 %v64, %v87
    %v198 = vsub.f32 %v65, %v87
    %v199 = vsub.f32 %v66, %v87
    %v200 = vmul.f32 %v196, 1.442695
    %v201 = vpow.pop %v200
    %v202 = vmul.f32 %v197, 1.442695
    %v203 = vpow.pop %v202
    %v204 = vmul.f32 %v198, 1.442695
    %v205 = vpow.pop %v204
    %v206 = vmul.f32 %v199, 1.442695
    %v207 = vpow.pop %v206
    %v208 = vadd.f32 %v201, %v203
    %v209 = vadd.f32 %v208, %v205
    %v210 = vsel %vm77, %v207, 0.0
    %v211 = vadd.f32 %v209, %v210
    %v212 = vrot.slane %v211, 4
    %v213 = vadd.f32 %v211, %v212
    %v214 = vrot.slane %v213, 2
    %v215 = vadd.f32 %v213, %v214
    %v216 = vrot.slane %v215, 1
    %v217 = vadd.f32 %v215, %v216
    %v218 = vlog2.pop %v217
    %v219 = vmul.f32 %v218, 0.6931472
    %v220 = vadd.f32 %v219, %v87
    %v221 = vmul.f32 %v133, %v63
    %v222 = vmul.f32 %v134, %v64
    %v223 = vmul.f32 %v135, %v65
    %v224 = vmul.f32 %v136, %v66
    %v225 = vadd.f32 %v221, %v222
    %v226 = vadd.f32 %v225, %v223
    %v227 = vsel %vm77, %v224, 0.0
    %v228 = vadd.f32 %v226, %v227
    %v229 = vrot.slane %v228, 4
    %v230 = vadd.f32 %v228, %v229
    %v231 = vrot.slane %v230, 2
    %v232 = vadd.f32 %v230, %v231
    %v233 = vrot.slane %v232, 1
    %v234 = vadd.f32 %v232, %v233
    %v235 = vadd.f32 %v63, %v64
    %v236 = vadd.f32 %v235, %v65
    %v237 = vsel %vm77, %v66, 0.0
    %v238 = vadd.f32 %v236, %v237
    %v239 = vrot.slane %v238, 4
    %v240 = vadd.f32 %v238, %v239
    %v241 = vrot.slane %v240, 2
    %v242 = vadd.f32 %v240, %v241
    %v243 = vrot.slane %v242, 1
    %v244 = vadd.f32 %v242, %v243
    %v245 = vsub.f32 %v234, %v220
    %v246 = vmul.f32 %v245, 0.996
    %v247 = vmul.f32 %v220, 26.0
    %v248 = vsub.f32 %v244, %v247
    %v249 = vmul.f32 %v248, 0.00015384615
    %v250 = vadd.f32 %v246, %v249
    %v251 = vsub.f32 0.0, %v250
    %v252 = vlaneseq
    %v253 = vand.u32 %v252, 127
    %s254 = smul.u32 0, 128
    %v255 = vstv %s254
    %v256 = vadd.s32 %v255, %v253
    %vm257 = vcmp.lt.s32.totalorder %v256, 8
    %v258 = vsel %vm257, 1, 0
    %v259 = vcvt.s32.f32 %v258
    %v260 = vmul.f32 %v195, %v259
    %261 = vst [vmem:[#allocation8] sm:$0x1] %v260
    %v262 = vmul.f32 %v251, %v259
    %263 = vst [vmem:[#allocation9] sm:$0x1] %v262
    // Predicated region
    $region26: #{tpu_custom_call.1} parent=1 // pred_check
      _
    $region27: #{tpu_custom_call.1} parent=1 // pred_check_branch
      %265 = sbr.rel (0) target = $region29
    $region28: #{tpu_custom_call.1} parent=1 // pred_region
      %267 = vsyncadd [#allocation4], 0
      %s269 = sshll.u32 [#allocation8], 4
      %s270 = int_to_ptr.vmem [resolvable:$true] %s269
      %s271 = sshll.u32 %s3, 4
      %s272 = int_to_ptr.hbm [resolvable:$true] %s271
      %274 = dma.vmem_to_hbm [thread:$0]  %s270, 16, %s272, [#allocation4]
    $region29: #{tpu_custom_call.1} parent=1 // pred_fallthru
      _
    // Predicated region
    $region30: #{tpu_custom_call.1} parent=1 // pred_check
      _
    $region31: #{tpu_custom_call.1} parent=1 // pred_check_branch
      %276 = sbr.rel (0) target = $region33
    $region32: #{tpu_custom_call.1} parent=1 // pred_region
      %278 = vsyncadd [#allocation10], 0
      %s280 = sshll.u32 [#allocation9], 4
      %s281 = int_to_ptr.vmem [resolvable:$true] %s280
      %s282 = sshll.u32 %s4, 4
      %s283 = int_to_ptr.hbm [resolvable:$true] %s282
      %285 = dma.vmem_to_hbm [thread:$0]  %s281, 16, %s283, [#allocation10]
    $region33: #{tpu_custom_call.1} parent=1 // pred_fallthru
      _
    // Predicated region
    $region34: #{tpu_custom_call.1} parent=1 // pred_check
      _
    $region35: #{tpu_custom_call.1} parent=1 // pred_check_branch
      %287 = sbr.rel (0) target = $region37
    $region36: #{tpu_custom_call.1} parent=1 // pred_region
      %289 = dma.done [#allocation4], 16
    $region37: #{tpu_custom_call.1} parent=1 // pred_fallthru
      _
    // Predicated region
    $region38: #{tpu_custom_call.1} parent=1 // pred_check
      _
    $region39: #{tpu_custom_call.1} parent=1 // pred_check_branch
      %291 = sbr.rel (0) target = $region41
    $region40: #{tpu_custom_call.1} parent=1 // pred_region
      %293 = dma.done [#allocation10], 16
    $region41: #{tpu_custom_call.1} parent=1 // pred_fallthru
      _
    %294 = vsyncpa [#allocation3], 1
    %295 = vsyncpa [#allocation6], 1
    %296 = vsyncpa [#allocation4], 1
    %297 = vsyncpa [#allocation10], 1

</llo_original>
